<compile_context>
chip_gen: v7x
topology: tpu7x:2x2x1
jax: 0.10.0
libtpu: 0.0.40
codegen_flags: <defaults>
</compile_context>

<pallas_src>
import functools

import jax
import jax.numpy as jnp
from jax.experimental import pallas as pl
from jax.experimental.pallas import tpu as pltpu


EXTRACTOR_WEIGHTS = (1.0, 0.5)


# -----------------------------------------------------------------------------
# Pallas kernels
# -----------------------------------------------------------------------------
def _conv_relu_feat_l1_kernel(w_ref, ax_ref, ay_ref, b_ref,
                              fx_ref, fy_ref, loss_ref, *, scale):
    """relu(W @ A + b) for the x and y halves + fused weighted-L1 accumulation.

    w:  (Cout, K)  bf16 (block index constant -> resident across the M grid)
    ax: (K, tm)    bf16 im2col(x) column tile
    ay: (K, tm)    bf16 im2col(y) column tile
    b:  (Cout, 1)  f32
    fx/fy: (Cout, tm) bf16 lane-dense feature tiles (next layer's input)
    loss: (1, 1)   f32 SMEM accumulator, resident across the grid
    """
    @pl.when(pl.program_id(0) == 0)
    def _():
        loss_ref[0, 0] = 0.0

    w = w_ref[...]
    bias = b_ref[...]
    fx = jnp.maximum(
        jnp.dot(w, ax_ref[...], preferred_element_type=jnp.float32) + bias, 0.0)
    fy = jnp.maximum(
        jnp.dot(w, ay_ref[...], preferred_element_type=jnp.float32) + bias, 0.0)
    fx_ref[...] = fx.astype(fx_ref.dtype)
    fy_ref[...] = fy.astype(fy_ref.dtype)
    loss_ref[0, 0] = loss_ref[0, 0] + jnp.sum(jnp.abs(fx - fy)) * scale


def _conv_relu_l1_kernel(w_ref, ax_ref, ay_ref, b_ref, loss_ref, *, scale):
    """Last layer: same math, but the features never leave VMEM."""
    @pl.when(pl.program_id(0) == 0)
    def _():
        loss_ref[0, 0] = 0.0

    w = w_ref[...]
    bias = b_ref[...]
    fx = jnp.maximum(
        jnp.dot(w, ax_ref[...], preferred_element_type=jnp.float32) + bias, 0.0)
    fy = jnp.maximum(
        jnp.dot(w, ay_ref[...], preferred_element_type=jnp.float32) + bias, 0.0)
    loss_ref[0, 0] = loss_ref[0, 0] + jnp.sum(jnp.abs(fx - fy)) * scale


def _pick_tile(m):
    # Largest lane tile (multiple of 128) that divides M; full M otherwise.
    for t in (2048, 1024, 512, 256, 128):
        if m % t == 0:
            return t
    return m


def _layer_feat_and_loss(w2d, bias, ax, ay, layer_weight):
    cout, k = w2d.shape
    _, m = ax.shape
    tm = _pick_tile(m)
    scale = float(layer_weight) / float(cout * m)     # L1 mean + extractor weight
    kernel = functools.partial(_conv_relu_feat_l1_kernel, scale=scale)
    fx, fy, loss = pl.pallas_call(
        kernel,
        out_shape=(
            jax.ShapeDtypeStruct((cout, m), jnp.bfloat16),
            jax.ShapeDtypeStruct((cout, m), jnp.bfloat16),
            jax.ShapeDtypeStruct((1, 1), jnp.float32),
        ),
        grid=(m // tm,),
        in_specs=[
            pl.BlockSpec((cout, k), lambda i: (0, 0)),
            pl.BlockSpec((k, tm), lambda i: (0, i)),
            pl.BlockSpec((k, tm), lambda i: (0, i)),
            pl.BlockSpec((cout, 1), lambda i: (0, 0)),
        ],
        out_specs=(
            pl.BlockSpec((cout, tm), lambda i: (0, i)),
            pl.BlockSpec((cout, tm), lambda i: (0, i)),
            pl.BlockSpec(memory_space=pltpu.SMEM),
        ),
        compiler_params=pltpu.CompilerParams(
            dimension_semantics=("arbitrary",)),
    )(w2d, ax, ay, bias)
    return fx, fy, loss[0, 0]


def _layer_loss_only(w2d, bias, ax, ay, layer_weight):
    cout, k = w2d.shape
    _, m = ax.shape
    tm = _pick_tile(m)
    scale = float(layer_weight) / float(cout * m)
    kernel = functools.partial(_conv_relu_l1_kernel, scale=scale)
    loss = pl.pallas_call(
        kernel,
        out_shape=jax.ShapeDtypeStruct((1, 1), jnp.float32),
        grid=(m // tm,),
        in_specs=[
            pl.BlockSpec((cout, k), lambda i: (0, 0)),
            pl.BlockSpec((k, tm), lambda i: (0, i)),
            pl.BlockSpec((k, tm), lambda i: (0, i)),
            pl.BlockSpec((cout, 1), lambda i: (0, 0)),
        ],
        out_specs=pl.BlockSpec(memory_space=pltpu.SMEM),
        compiler_params=pltpu.CompilerParams(
            dimension_semantics=("arbitrary",)),
    )(w2d, ax, ay, bias)
    return loss[0, 0]


# -----------------------------------------------------------------------------
# Channel-first im2col (pad + 9 static slices, no transposes)
# -----------------------------------------------------------------------------
def _im2col_3x3_cf(x_cf):
    # x_cf: (C, B, H, W) -> (C*9, B*H*W), K index = c*9 + kh*3 + kw
    c, b, h, w = x_cf.shape
    xp = jnp.pad(x_cf, ((0, 0), (0, 0), (1, 1), (1, 1)))
    patches = [xp[:, :, di:di + h, dj:dj + w]
               for di in range(3) for dj in range(3)]
    p = jnp.stack(patches, axis=1)          # (C, 9, B, H, W)
    return p.reshape(c * 9, b * h * w)


# -----------------------------------------------------------------------------
# Synthetic extractor params + FelixLoss forward
# -----------------------------------------------------------------------------
def _init_extractor_params(key, channels):
    # channels: e.g. (4, 8, 16) -> two conv layers 4->8, 8->16, kernel 3x3.
    params = []
    for i in range(len(channels) - 1):
        cin, cout = channels[i], channels[i + 1]
        key, k1, k2 = jax.random.split(key, 3)
        fan_in = cin * 9
        w = jax.random.normal(k1, (cout, cin, 3, 3), jnp.float32) * (2.0 / fan_in) ** 0.5
        b = jax.random.normal(k2, (cout,), jnp.float32) * 0.01
        params.append((w, b))
    return params


@jax.jit
def felix_loss(params, x, y):
    n, _, h, w = x.shape
    # One transpose per input to channel-first; bf16 MXU inputs from here on.
    x_cf = jnp.transpose(x, (1, 0, 2, 3)).astype(jnp.bfloat16)   # (C, N, H, W)
    y_cf = jnp.transpose(y, (1, 0, 2, 3)).astype(jnp.bfloat16)
    ax = _im2col_3x3_cf(x_cf)                                    # (C*9, N*H*W)
    ay = _im2col_3x3_cf(y_cf)

    (w1, b1), (w2, b2) = params
    c1, c2 = w1.shape[0], w2.shape[0]
    w1f = w1.reshape(c1, -1).astype(jnp.bfloat16)                # (Cout1, Cin*9)
    w2f = w2.reshape(c2, -1).astype(jnp.bfloat16)

    # Layer 1: features (lane-dense, bf16) + weighted L1 fused in one call.
    # NOTE: Y features are .detach()'d in PyTorch; forward value is identical.
    fx1, fy1, l1 = _layer_feat_and_loss(
        w1f, b1.reshape(c1, 1), ax, ay, EXTRACTOR_WEIGHTS[0])

    # Layer 2: im2col of the (C1, N, H, W) features, loss-only kernel.
    ax2 = _im2col_3x3_cf(fx1.reshape(c1, n, h, w))
    ay2 = _im2col_3x3_cf(fy1.reshape(c1, n, h, w))
    l2 = _layer_loss_only(
        w2f, b2.reshape(c2, 1), ax2, ay2, EXTRACTOR_WEIGHTS[1])

    return l1 + l2


# -----------------------------------------------------------------------------
# Pure-JAX f32 reference (for a loose forward-parity check)
# -----------------------------------------------------------------------------
@jax.jit
def _reference_loss(params, x, y):
    def extract(v):
        feats, cur = [], v
        for (wgt, bias) in params:
            out = jax.lax.conv_general_dilated(
                cur, wgt, window_strides=(1, 1), padding="SAME",
                dimension_numbers=("NCHW", "OIHW", "NCHW"))
            out = jax.nn.relu(out + bias.reshape(1, -1, 1, 1))
            feats.append(out)
            cur = out
        return feats
    xf, yf = extract(x), extract(y)
    loss = jnp.float32(0.0)
    for i, wgt in enumerate(EXTRACTOR_WEIGHTS):
        loss = loss + jnp.mean(jnp.abs(xf[i] - yf[i])) * wgt
    return loss


if __name__ == "__main__":
    key = jax.random.PRNGKey(0)
    kp, kx, ky = jax.random.split(key, 3)

    channels = (4, 8, 16)                 # Cin=4 -> 8 -> 16
    params = _init_extractor_params(kp, channels)

    N, C, H, W = 2, 4, 16, 16
    x = jax.random.normal(kx, (N, C, H, W), jnp.float32)
    y = jax.random.normal(ky, (N, C, H, W), jnp.float32)

    out = felix_loss(params, x, y)
    out = jax.block_until_ready(out)
    assert out.shape == () and bool(jnp.isfinite(out))

    # Loose parity check vs. f32 reference (kernel uses bf16 MXU inputs).
    ref = jax.block_until_ready(_reference_loss(params, x, y))
    assert abs(float(out) - float(ref)) <= 0.05 * abs(float(ref)) + 1e-3, (
        float(out), float(ref))

    print("KERNEL_OK")
</pallas_src>

<mosaic_0001>
module attributes {stable_mosaic.version = 11 : i64} {
  func.func @_conv_relu_feat_l1_kernel(%arg0: i32, %arg1: memref<8x36xbf16, #tpu.memory_space<vmem>>, %arg2: memref<36x512xbf16, #tpu.memory_space<vmem>>, %arg3: memref<36x512xbf16, #tpu.memory_space<vmem>>, %arg4: memref<8x1xf32, #tpu.memory_space<vmem>>, %arg5: memref<8x512xbf16, #tpu.memory_space<vmem>>, %arg6: memref<8x512xbf16, #tpu.memory_space<vmem>>, %arg7: memref<1x1xf32, #tpu.memory_space<smem>>) attributes {dimension_semantics = [#tpu.dimension_semantics<arbitrary>], iteration_bounds = array<i64: 1>, scalar_prefetch = 0 : i64, scratch_operands = 0 : i64, tpu.core_type = #tpu.core_type<tc>, window_params = [{pipeline_mode = #tpu.pipeline_mode<synchronous>, transform_indices = @transform_0, window_bounds = array<i64: 8, 36>}, {transform_indices = @transform_1, window_bounds = array<i64: 36, 512>}, {transform_indices = @transform_2, window_bounds = array<i64: 36, 512>}, {pipeline_mode = #tpu.pipeline_mode<synchronous>, transform_indices = @transform_3, window_bounds = array<i64: 8, 1>}, {transform_indices = @transform_4, window_bounds = array<i64: 8, 512>}, {transform_indices = @transform_5, window_bounds = array<i64: 8, 512>}, {transform_indices = @transform_6, window_bounds = array<i64: 1, 1>}]} {
    %c0_i32 = arith.constant 0 : i32
    %0 = arith.cmpi eq, %arg0, %c0_i32 : i32
    %1 = arith.extui %0 : i1 to i32
    %c0_i32_0 = arith.constant 0 : i32
    %2 = arith.cmpi ne, %1, %c0_i32_0 : i32
    scf.if %2 {
      %cst_21 = arith.constant 0.000000e+00 : f32
      %c0_22 = arith.constant 0 : index
      %c0_23 = arith.constant 0 : index
      %31 = memref.load %arg7[%c0_22, %c0_23] : memref<1x1xf32, #tpu.memory_space<smem>>
      memref.store %cst_21, %arg7[%c0_22, %c0_23] : memref<1x1xf32, #tpu.memory_space<smem>>
    } else {
    }
    %c0 = arith.constant 0 : index
    %c0_1 = arith.constant 0 : index
    %3 = vector.load %arg1[%c0, %c0_1] : memref<8x36xbf16, #tpu.memory_space<vmem>>, vector<8x36xbf16>
    %c0_2 = arith.constant 0 : index
    %c0_3 = arith.constant 0 : index
    %4 = vector.load %arg4[%c0_2, %c0_3] : memref<8x1xf32, #tpu.memory_space<vmem>>, vector<8x1xf32>
    %c0_4 = arith.constant 0 : index
    %c0_5 = arith.constant 0 : index
    %5 = vector.load %arg2[%c0_4, %c0_5] : memref<36x512xbf16, #tpu.memory_space<vmem>>, vector<36x512xbf16>
    %cst = arith.constant dense<0.000000e+00> : vector<8x512xf32>
    %6 = tpu.matmul %3, %5, %cst {dimension_numbers = #tpu.dot_dimension_numbers<[1], [0], [0], [1], [0, 0, 1, 1], [], []>} : vector<8x36xbf16>, vector<36x512xbf16>, vector<8x512xf32> -> vector<8x512xf32>
    %7 = vector.broadcast %4 : vector<8x1xf32> to vector<8x512xf32>
    %8 = arith.addf %6, %7 : vector<8x512xf32>
    %cst_6 = arith.constant 0.000000e+00 : f32
    %9 = vector.broadcast %cst_6 : f32 to vector<8x512xf32>
    %10 = arith.maximumf %8, %9 : vector<8x512xf32>
    %c0_7 = arith.constant 0 : index
    %c0_8 = arith.constant 0 : index
    %11 = vector.load %arg3[%c0_7, %c0_8] : memref<36x512xbf16, #tpu.memory_space<vmem>>, vector<36x512xbf16>
    %cst_9 = arith.constant dense<0.000000e+00> : vector<8x512xf32>
    %12 = tpu.matmul %3, %11, %cst_9 {dimension_numbers = #tpu.dot_dimension_numbers<[1], [0], [0], [1], [0, 0, 1, 1], [], []>} : vector<8x36xbf16>, vector<36x512xbf16>, vector<8x512xf32> -> vector<8x512xf32>
    %13 = vector.broadcast %4 : vector<8x1xf32> to vector<8x512xf32>
    %14 = arith.addf %12, %13 : vector<8x512xf32>
    %cst_10 = arith.constant 0.000000e+00 : f32
    %15 = vector.broadcast %cst_10 : f32 to vector<8x512xf32>
    %16 = arith.maximumf %14, %15 : vector<8x512xf32>
    %17 = arith.truncf %10 : vector<8x512xf32> to vector<8x512xbf16>
    %c0_11 = arith.constant 0 : index
    %c0_12 = arith.constant 0 : index
    %18 = vector.load %arg5[%c0_11, %c0_12] : memref<8x512xbf16, #tpu.memory_space<vmem>>, vector<8x512xbf16>
    tpu.vector_store %arg5[%c0_11, %c0_12], %17 {strides = array<i32>} : memref<8x512xbf16, #tpu.memory_space<vmem>>, vector<8x512xbf16>,
    %19 = arith.truncf %16 : vector<8x512xf32> to vector<8x512xbf16>
    %c0_13 = arith.constant 0 : index
    %c0_14 = arith.constant 0 : index
    %20 = vector.load %arg6[%c0_13, %c0_14] : memref<8x512xbf16, #tpu.memory_space<vmem>>, vector<8x512xbf16>
    tpu.vector_store %arg6[%c0_13, %c0_14], %19 {strides = array<i32>} : memref<8x512xbf16, #tpu.memory_space<vmem>>, vector<8x512xbf16>,
    %c0_15 = arith.constant 0 : index
    %c0_16 = arith.constant 0 : index
    %21 = memref.load %arg7[%c0_15, %c0_16] : memref<1x1xf32, #tpu.memory_space<smem>>
    %22 = arith.subf %10, %16 : vector<8x512xf32>
    %23 = math.absf %22 : vector<8x512xf32>
    %24 = vector.shape_cast %23 : vector<8x512xf32> to vector<1x8x512xf32>
    %cst_17 = arith.constant dense<0.000000e+00> : vector<1xf32>
    %25 = vector.multi_reduction <add>, %24, %cst_17 [1, 2] : vector<1x8x512xf32> to vector<1xf32>
    %26 = vector.shape_cast %25 : vector<1xf32> to vector<1x1x1xf32>
    %27 = vector.extract %26[0, 0, 0] : f32 from vector<1x1x1xf32>
    %cst_18 = arith.constant 2.44140625E-4 : f32
    %28 = arith.mulf %27, %cst_18 : f32
    %29 = arith.addf %21, %28 : f32
    %c0_19 = arith.constant 0 : index
    %c0_20 = arith.constant 0 : index
    %30 = memref.load %arg7[%c0_19, %c0_20] : memref<1x1xf32, #tpu.memory_space<smem>>
    memref.store %29, %arg7[%c0_19, %c0_20] : memref<1x1xf32, #tpu.memory_space<smem>>
    return
  }
  func.func @transform_0(%arg0: i32) -> (i32, i32) {
    %c0_i32 = arith.constant 0 : i32
    %c0_i32_0 = arith.constant 0 : i32
    %c0_i32_1 = arith.constant 0 : i32
    return %c0_i32, %c0_i32_0 : i32, i32
  }
  func.func @transform_1(%arg0: i32) -> (i32, i32) {
    %c0_i32 = arith.constant 0 : i32
    %c0_i32_0 = arith.constant 0 : i32
    return %c0_i32, %arg0 : i32, i32
  }
  func.func @transform_2(%arg0: i32) -> (i32, i32) {
    %c0_i32 = arith.constant 0 : i32
    %c0_i32_0 = arith.constant 0 : i32
    return %c0_i32, %arg0 : i32, i32
  }
  func.func @transform_3(%arg0: i32) -> (i32, i32) {
    %c0_i32 = arith.constant 0 : i32
    %c0_i32_0 = arith.constant 0 : i32
    %c0_i32_1 = arith.constant 0 : i32
    return %c0_i32, %c0_i32_0 : i32, i32
  }
  func.func @transform_4(%arg0: i32) -> (i32, i32) {
    %c0_i32 = arith.constant 0 : i32
    %c0_i32_0 = arith.constant 0 : i32
    return %c0_i32, %arg0 : i32, i32
  }
  func.func @transform_5(%arg0: i32) -> (i32, i32) {
    %c0_i32 = arith.constant 0 : i32
    %c0_i32_0 = arith.constant 0 : i32
    return %c0_i32, %arg0 : i32, i32
  }
  func.func @transform_6(%arg0: i32) -> (i32, i32) {
    %c0_i32 = arith.constant 0 : i32
    %c0_i32_0 = arith.constant 0 : i32
    %c0_i32_1 = arith.constant 0 : i32
    return %c0_i32, %c0_i32_0 : i32, i32
  }
}

module attributes {stable_mosaic.version = 11 : i64} {
  func.func @_conv_relu_l1_kernel(%arg0: i32, %arg1: memref<16x72xbf16, #tpu.memory_space<vmem>>, %arg2: memref<72x512xbf16, #tpu.memory_space<vmem>>, %arg3: memref<72x512xbf16, #tpu.memory_space<vmem>>, %arg4: memref<16x1xf32, #tpu.memory_space<vmem>>, %arg5: memref<1x1xf32, #tpu.memory_space<smem>>) attributes {dimension_semantics = [#tpu.dimension_semantics<arbitrary>], iteration_bounds = array<i64: 1>, scalar_prefetch = 0 : i64, scratch_operands = 0 : i64, tpu.core_type = #tpu.core_type<tc>, window_params = [{pipeline_mode = #tpu.pipeline_mode<synchronous>, transform_indices = @transform_0, window_bounds = array<i64: 16, 72>}, {transform_indices = @transform_1, window_bounds = array<i64: 72, 512>}, {transform_indices = @transform_2, window_bounds = array<i64: 72, 512>}, {pipeline_mode = #tpu.pipeline_mode<synchronous>, transform_indices = @transform_3, window_bounds = array<i64: 16, 1>}, {transform_indices = @transform_4, window_bounds = array<i64: 1, 1>}]} {
    %c0_i32 = arith.constant 0 : i32
    %0 = arith.cmpi eq, %arg0, %c0_i32 : i32
    %1 = arith.extui %0 : i1 to i32
    %c0_i32_0 = arith.constant 0 : i32
    %2 = arith.cmpi ne, %1, %c0_i32_0 : i32
    scf.if %2 {
      %cst_17 = arith.constant 0.000000e+00 : f32
      %c0_18 = arith.constant 0 : index
      %c0_19 = arith.constant 0 : index
      %27 = memref.load %arg5[%c0_18, %c0_19] : memref<1x1xf32, #tpu.memory_space<smem>>
      memref.store %cst_17, %arg5[%c0_18, %c0_19] : memref<1x1xf32, #tpu.memory_space<smem>>
    } else {
    }
    %c0 = arith.constant 0 : index
    %c0_1 = arith.constant 0 : index
    %3 = vector.load %arg1[%c0, %c0_1] : memref<16x72xbf16, #tpu.memory_space<vmem>>, vector<16x72xbf16>
    %c0_2 = arith.constant 0 : index
    %c0_3 = arith.constant 0 : index
    %4 = vector.load %arg4[%c0_2, %c0_3] : memref<16x1xf32, #tpu.memory_space<vmem>>, vector<16x1xf32>
    %c0_4 = arith.constant 0 : index
    %c0_5 = arith.constant 0 : index
    %5 = vector.load %arg2[%c0_4, %c0_5] : memref<72x512xbf16, #tpu.memory_space<vmem>>, vector<72x512xbf16>
    %cst = arith.constant dense<0.000000e+00> : vector<16x512xf32>
    %6 = tpu.matmul %3, %5, %cst {dimension_numbers = #tpu.dot_dimension_numbers<[1], [0], [0], [1], [0, 0, 1, 1], [], []>} : vector<16x72xbf16>, vector<72x512xbf16>, vector<16x512xf32> -> vector<16x512xf32>
    %7 = vector.broadcast %4 : vector<16x1xf32> to vector<16x512xf32>
    %8 = arith.addf %6, %7 : vector<16x512xf32>
    %cst_6 = arith.constant 0.000000e+00 : f32
    %9 = vector.broadcast %cst_6 : f32 to vector<16x512xf32>
    %10 = arith.maximumf %8, %9 : vector<16x512xf32>
    %c0_7 = arith.constant 0 : index
    %c0_8 = arith.constant 0 : index
    %11 = vector.load %arg3[%c0_7, %c0_8] : memref<72x512xbf16, #tpu.memory_space<vmem>>, vector<72x512xbf16>
    %cst_9 = arith.constant dense<0.000000e+00> : vector<16x512xf32>
    %12 = tpu.matmul %3, %11, %cst_9 {dimension_numbers = #tpu.dot_dimension_numbers<[1], [0], [0], [1], [0, 0, 1, 1], [], []>} : vector<16x72xbf16>, vector<72x512xbf16>, vector<16x512xf32> -> vector<16x512xf32>
    %13 = vector.broadcast %4 : vector<16x1xf32> to vector<16x512xf32>
    %14 = arith.addf %12, %13 : vector<16x512xf32>
    %cst_10 = arith.constant 0.000000e+00 : f32
    %15 = vector.broadcast %cst_10 : f32 to vector<16x512xf32>
    %16 = arith.maximumf %14, %15 : vector<16x512xf32>
    %c0_11 = arith.constant 0 : index
    %c0_12 = arith.constant 0 : index
    %17 = memref.load %arg5[%c0_11, %c0_12] : memref<1x1xf32, #tpu.memory_space<smem>>
    %18 = arith.subf %10, %16 : vector<16x512xf32>
    %19 = math.absf %18 : vector<16x512xf32>
    %20 = vector.shape_cast %19 : vector<16x512xf32> to vector<1x16x512xf32>
    %cst_13 = arith.constant dense<0.000000e+00> : vector<1xf32>
    %21 = vector.multi_reduction <add>, %20, %cst_13 [1, 2] : vector<1x16x512xf32> to vector<1xf32>
    %22 = vector.shape_cast %21 : vector<1xf32> to vector<1x1x1xf32>
    %23 = vector.extract %22[0, 0, 0] : f32 from vector<1x1x1xf32>
    %cst_14 = arith.constant 6.10351563E-5 : f32
    %24 = arith.mulf %23, %cst_14 : f32
    %25 = arith.addf %17, %24 : f32
    %c0_15 = arith.constant 0 : index
    %c0_16 = arith.constant 0 : index
    %26 = memref.load %arg5[%c0_15, %c0_16] : memref<1x1xf32, #tpu.memory_space<smem>>
    memref.store %25, %arg5[%c0_15, %c0_16] : memref<1x1xf32, #tpu.memory_space<smem>>
    return
  }
  func.func @transform_0(%arg0: i32) -> (i32, i32) {
    %c0_i32 = arith.constant 0 : i32
    %c0_i32_0 = arith.constant 0 : i32
    %c0_i32_1 = arith.constant 0 : i32
    return %c0_i32, %c0_i32_0 : i32, i32
  }
  func.func @transform_1(%arg0: i32) -> (i32, i32) {
    %c0_i32 = arith.constant 0 : i32
    %c0_i32_0 = arith.constant 0 : i32
    return %c0_i32, %arg0 : i32, i32
  }
  func.func @transform_2(%arg0: i32) -> (i32, i32) {
    %c0_i32 = arith.constant 0 : i32
    %c0_i32_0 = arith.constant 0 : i32
    return %c0_i32, %arg0 : i32, i32
  }
  func.func @transform_3(%arg0: i32) -> (i32, i32) {
    %c0_i32 = arith.constant 0 : i32
    %c0_i32_0 = arith.constant 0 : i32
    %c0_i32_1 = arith.constant 0 : i32
    return %c0_i32, %c0_i32_0 : i32, i32
  }
  func.func @transform_4(%arg0: i32) -> (i32, i32) {
    %c0_i32 = arith.constant 0 : i32
    %c0_i32_0 = arith.constant 0 : i32
    %c0_i32_1 = arith.constant 0 : i32
    return %c0_i32, %c0_i32_0 : i32, i32
  }
}

</mosaic_0001>

<llo_original>
// kernel: felix_loss.2
$region0: #{felix_loss.2}
  #allocation0 [shape = 'u32[]', space=smem, size = 0x4, offset = 0x4, fixed_abs, tag = 'smem constant byte address 0x4 - core index']
  #allocation1 [shape = 'u32[144,128]{1,0:T(1,128)}', space=vmem, size = 0x12000, scoped, tag = 'internal scratch']
  %s0 = inlined_call_operand.vmem [shape: bf16[8,36], index: 0, kind: input, shape index: {}]
  %s1 = inlined_call_operand.vmem [shape: bf16[36,512], index: 1, kind: input, shape index: {}]
  %s2 = inlined_call_operand.vmem [shape: bf16[36,512], index: 2, kind: input, shape index: {}]
  %s3 = inlined_call_operand.vmem [shape: f32[8,1], index: 3, kind: input, shape index: {}]
  %s4 = inlined_call_operand.vmem [shape: bf16[8,512], index: 4, kind: output, shape index: {0}]
  %s5 = inlined_call_operand.vmem [shape: bf16[8,512], index: 5, kind: output, shape index: {1}]
  %s6 = inlined_call_operand.hbm [shape: f32[1,1], index: 6, kind: output, shape index: {2}]
  %7 = xla_tuple %s4, %s5, %s6
  %s8 = sld [smem:[#allocation0]]
  $region46: #{felix_loss.2} parent=0
    _
  %s10 = ssub.s32 1, %s8
  %s11 = scalar_select 0, %s10, %s8
  $region1: #{felix_loss.2} parent=0
    #allocation2 [shape = 'u8[512]{0}', space=smem, size = 0x200, scoped, tag = 'output window, operand 2, single buffered']
    #allocation3 [shape = 's32[1]{0}', space=sflag, size = 0x4, scoped, tag = 'scoped memory for felix_loss.2']
    %12 = vsyncpa [#allocation3], 0
    // Predicated region
    $region2: #{felix_loss.2} parent=1 // pred_check
      _
    $region3: #{felix_loss.2} parent=1 // pred_check_branch
      %14 = sbr.rel (0) target = $region5
    $region4: #{felix_loss.2} parent=1 // pred_region
      _
    $region5: #{felix_loss.2} parent=1 // pred_fallthru
      _
    // Predicated region
    $region6: #{felix_loss.2} parent=1 // pred_check
      _
    $region7: #{felix_loss.2} parent=1 // pred_check_branch
      %16 = sbr.rel (0) target = $region9
    $region8: #{felix_loss.2} parent=1 // pred_region
      _
    $region9: #{felix_loss.2} parent=1 // pred_fallthru
      _
    // Predicated region
    $region10: #{felix_loss.2} parent=1 // pred_check
      _
    $region11: #{felix_loss.2} parent=1 // pred_check_branch
      %18 = sbr.rel (0) target = $region13
    $region12: #{felix_loss.2} parent=1 // pred_region
      _
    $region13: #{felix_loss.2} parent=1 // pred_fallthru
      _
    // Predicated region
    $region14: #{felix_loss.2} parent=1 // pred_check
      _
    $region15: #{felix_loss.2} parent=1 // pred_check_branch
      %20 = sbr.rel (0) target = $region17
    $region16: #{felix_loss.2} parent=1 // pred_region
      _
    $region17: #{felix_loss.2} parent=1 // pred_fallthru
      _
    %p22 = scmp.eq.s32.totalorder 0, 0
    // Predicated region
    $region18: #{felix_loss.2} parent=1 // pred_check
      %p23 = pneg %p22
    $region19: #{felix_loss.2} parent=1 // pred_check_branch
      %25 = sbr.rel (%p23) target = $region21
    $region20: #{felix_loss.2} parent=1 // pred_region
      %s26 = scalar_lea.smem [#allocation2], 0
      %27 = sst [smem:[%s26]] 0.0
    $region21: #{felix_loss.2} parent=1 // pred_fallthru
      _
    %v28 = vld [vmem:[%s0] sm:$0xf]
    %v29 = vld [vmem:[%s3] sm:$0xff]
    %v30 = vld [vmem:[%s1] sm:$0xff]
    %v31 = vld [vmem:[%s1 + $0x8] sm:$0xff]
    %v32 = vld [vmem:[%s1 + $0x10] sm:$0xff]
    %v33 = vld [vmem:[%s1 + $0x18] sm:$0xff]
    %v34 = vld [vmem:[%s1 + $0x20] sm:$0xff]
    %v35 = vld [vmem:[%s1 + $0x28] sm:$0xff]
    %v36 = vld [vmem:[%s1 + $0x30] sm:$0xff]
    %v37 = vld [vmem:[%s1 + $0x38] sm:$0xff]
    %v38 = vld [vmem:[%s1 + $0x40] sm:$0x33]
    %v39 = vld [vmem:[%s1 + $0x48] sm:$0x33]
    %41 = vset.pattern.permute.xlu0 0
    %42 = vperm.xlu0 %41, %v29
    %v43 = vpop.permute.xlu0 %42
    %v55 = vunpack.c.l.b16 %v30
    %v56 = vunpack.c.h.b16 %v30
    %v57 = vunpack.c.l.b16 %v31
    %v58 = vunpack.c.h.b16 %v31
    %v59 = vunpack.c.l.b16 %v32
    %v60 = vunpack.c.h.b16 %v32
    %v61 = vunpack.c.l.b16 %v33
    %v62 = vunpack.c.h.b16 %v33
    %v63 = vunpack.c.l.b16 %v34
    %v64 = vunpack.c.h.b16 %v34
    %v65 = vunpack.c.l.b16 %v35
    %v66 = vunpack.c.h.b16 %v35
    %v67 = vunpack.c.l.b16 %v36
    %v68 = vunpack.c.h.b16 %v36
    %v69 = vunpack.c.l.b16 %v37
    %v70 = vunpack.c.h.b16 %v37
    %v71 = vunpack.c.l.b16 %v38
    %v72 = vunpack.c.h.b16 %v38
    %v73 = vunpack.c.l.b16 %v39
    %v74 = vunpack.c.h.b16 %v39
    %v75 = vpack.c.b16 %v59, %v55
    %v76 = vpack.c.b16 %v60, %v56
    %v77 = vpack.c.b16 %v61, %v57
    %v78 = vpack.c.b16 %v62, %v58
    %v79 = vpack.c.b16 %v67, %v63
    %v80 = vpack.c.b16 %v68, %v64
    %v81 = vpack.c.b16 %v69, %v65
    %v82 = vpack.c.b16 %v70, %v66
    %v83 = vpack.c.b16 %v71, %v71
    %v84 = vpack.c.b16 %v72, %v72
    %v85 = vpack.c.b16 %v73, %v73
    %v86 = vpack.c.b16 %v74, %v74
    %vm95 = vcmask 293888
    %v97 = vsel %vm95, %v28, 0
    %vm99 = vcmask 1041408
    %v101 = vsel %vm99, %v83, 0
    %v104 = vsel %vm99, %v84, 0
    %v107 = vsel %vm99, %v85, 0
    %v110 = vsel %vm99, %v86, 0
    %112 = vmatprep.subr.bf16.mxu0 %v76
    %113 = vmatpush1.bf16.msra.mxu0 %v75
    %114 = vmatprep.subr.bf16.mxu0 %v80
    %115 = vmatpush1.bf16.msra.mxu0 %v79
    %116 = vmatprep.subr.bf16.mxu0 %v104
    %117 = vmatpush1.bf16.msra.mxu0 %v101
    %118 = vmatprep.subr.bf16.mxu0 0
    %119 = vmatpush1.bf16.msra.mxu0 0
    %120 = vmatprep.subr.bf16.mxu0 0
    %121 = vmatpush1.bf16.msra.mxu0 0
    %122 = vmatprep.subr.bf16.mxu0 0
    %123 = vmatpush1.bf16.msra.mxu0 0
    %124 = vmatprep.subr.bf16.mxu0 0
    %125 = vmatpush1.bf16.msra.mxu0 0
    %126 = vmatprep.subr.bf16.mxu0 0
    %127 = vmatpush1.bf16.msra.mxu0 0
    %128 = vmatprep.subr.bf16.mxu0 0
    %129 = vmatpush1.bf16.msra.mxu0 0
    %130 = vmatprep.subr.bf16.mxu0 0
    %131 = vmatpush1.bf16.msra.mxu0 0
    %132 = vmatprep.subr.bf16.mxu0 0
    %133 = vmatpush1.bf16.msra.mxu0 0
    %134 = vmatprep.subr.bf16.mxu0 0
    %135 = vmatpush1.bf16.msra.mxu0 0
    %136 = vmatprep.subr.bf16.mxu0 0
    %137 = vmatpush1.bf16.msra.mxu0 0
    %138 = vmatprep.subr.bf16.mxu0 0
    %139 = vmatpush1.bf16.msra.mxu0 0
    %140 = vmatprep.subr.bf16.mxu0 0
    %141 = vmatpush1.bf16.msra.mxu0 0
    %142 = vmatprep.subr.bf16.mxu0 0
    %143 = vmatpush1.bf16.msra.mxu0 0
    %144 = vmatprep.mubr.bf16.mxu0 0
    %145 = vmatmul.mubr.bf16.gmra.mrb[0].mxu0 %v97
    %v146 = vpop.f32.mrb[0].mxu0
    %v147 = vadd.f32 %v43, %v146
    %v148 = vpop.f32.mrb[0].mxu0
    %v149 = vadd.f32 %v43, %v148
    %v150 = vpop.f32.mrb[0].mxu0
    %v151 = vpop.f32.mrb[0].mxu0
    %152 = vdwg.mxu0
    %153 = vmatprep.subr.bf16.mxu0 %v78
    %154 = vmatpush1.bf16.msra.mxu0 %v77
    %155 = vmatprep.subr.bf16.mxu0 %v82
    %156 = vmatpush1.bf16.msra.mxu0 %v81
    %157 = vmatprep.subr.bf16.mxu0 %v110
    %158 = vmatpush1.bf16.msra.mxu0 %v107
    %159 = vmatprep.subr.bf16.mxu0 0
    %160 = vmatpush1.bf16.msra.mxu0 0
    %161 = vmatprep.subr.bf16.mxu0 0
    %162 = vmatpush1.bf16.msra.mxu0 0
    %163 = vmatprep.subr.bf16.mxu0 0
    %164 = vmatpush1.bf16.msra.mxu0 0
    %165 = vmatprep.subr.bf16.mxu0 0
    %166 = vmatpush1.bf16.msra.mxu0 0
    %167 = vmatprep.subr.bf16.mxu0 0
    %168 = vmatpush1.bf16.msra.mxu0 0
    %169 = vmatprep.subr.bf16.mxu0 0
    %170 = vmatpush1.bf16.msra.mxu0 0
    %171 = vmatprep.subr.bf16.mxu0 0
    %172 = vmatpush1.bf16.msra.mxu0 0
    %173 = vmatprep.subr.bf16.mxu0 0
    %174 = vmatpush1.bf16.msra.mxu0 0
    %175 = vmatprep.subr.bf16.mxu0 0
    %176 = vmatpush1.bf16.msra.mxu0 0
    %177 = vmatprep.subr.bf16.mxu0 0
    %178 = vmatpush1.bf16.msra.mxu0 0
    %179 = vmatprep.subr.bf16.mxu0 0
    %180 = vmatpush1.bf16.msra.mxu0 0
    %181 = vmatprep.subr.bf16.mxu0 0
    %182 = vmatpush1.bf16.msra.mxu0 0
    %183 = vmatprep.subr.bf16.mxu0 0
    %184 = vmatpush1.bf16.msra.mxu0 0
    %185 = vmatprep.mubr.bf16.mxu0 0
    %186 = vmatmul.mubr.bf16.gmra.mrb[0].mxu0 %v97
    %v187 = vpop.f32.mrb[0].mxu0
    %v188 = vadd.f32 %v43, %v187
    %v189 = vpop.f32.mrb[0].mxu0
    %v190 = vadd.f32 %v43, %v189
    %v191 = vpop.f32.mrb[0].mxu0
    %v192 = vpop.f32.mrb[0].mxu0
    %193 = vdwg.mxu0
    %v194 = vmax.f32 %v147, 0.0
    %v195 = vmax.f32 %v149, 0.0
    %v196 = vmax.f32 %v188, 0.0
    %v197 = vmax.f32 %v190, 0.0
    %v198 = vld [vmem:[%s2] sm:$0xff]
    %v199 = vld [vmem:[%s2 + $0x8] sm:$0xff]
    %v200 = vld [vmem:[%s2 + $0x10] sm:$0xff]
    %v201 = vld [vmem:[%s2 + $0x18] sm:$0xff]
    %v202 = vld [vmem:[%s2 + $0x20] sm:$0xff]
    %v203 = vld [vmem:[%s2 + $0x28] sm:$0xff]
    %v204 = vld [vmem:[%s2 + $0x30] sm:$0xff]
    %v205 = vld [vmem:[%s2 + $0x38] sm:$0xff]
    %v206 = vld [vmem:[%s2 + $0x40] sm:$0x33]
    %v207 = vld [vmem:[%s2 + $0x48] sm:$0x33]
    %v218 = vunpack.c.l.b16 %v198
    %v219 = vunpack.c.h.b16 %v198
    %v220 = vunpack.c.l.b16 %v199
    %v221 = vunpack.c.h.b16 %v199
    %v222 = vunpack.c.l.b16 %v200
    %v223 = vunpack.c.h.b16 %v200
    %v224 = vunpack.c.l.b16 %v201
    %v225 = vunpack.c.h.b16 %v201
    %v226 = vunpack.c.l.b16 %v202
    %v227 = vunpack.c.h.b16 %v202
    %v228 = vunpack.c.l.b16 %v203
    %v229 = vunpack.c.h.b16 %v203
    %v230 = vunpack.c.l.b16 %v204
    %v231 = vunpack.c.h.b16 %v204
    %v232 = vunpack.c.l.b16 %v205
    %v233 = vunpack.c.h.b16 %v205
    %v234 = vunpack.c.l.b16 %v206
    %v235 = vunpack.c.h.b16 %v206
    %v236 = vunpack.c.l.b16 %v207
    %v237 = vunpack.c.h.b16 %v207
    %v238 = vpack.c.b16 %v222, %v218
    %v239 = vpack.c.b16 %v223, %v219
    %v240 = vpack.c.b16 %v224, %v220
    %v241 = vpack.c.b16 %v225, %v221
    %v242 = vpack.c.b16 %v230, %v226
    %v243 = vpack.c.b16 %v231, %v227
    %v244 = vpack.c.b16 %v232, %v228
    %v245 = vpack.c.b16 %v233, %v229
    %v246 = vpack.c.b16 %v234, %v234
    %v247 = vpack.c.b16 %v235, %v235
    %v248 = vpack.c.b16 %v236, %v236
    %v249 = vpack.c.b16 %v237, %v237
    %v259 = vsel %vm99, %v246, 0
    %v262 = vsel %vm99, %v247, 0
    %v265 = vsel %vm99, %v248, 0
    %v268 = vsel %vm99, %v249, 0
    %270 = vmatprep.subr.bf16.mxu0 %v239
    %271 = vmatpush1.bf16.msra.mxu0 %v238
    %272 = vmatprep.subr.bf16.mxu0 %v243
    %273 = vmatpush1.bf16.msra.mxu0 %v242
    %274 = vmatprep.subr.bf16.mxu0 %v262
    %275 = vmatpush1.bf16.msra.mxu0 %v259
    %276 = vmatprep.subr.bf16.mxu0 0
    %277 = vmatpush1.bf16.msra.mxu0 0
    %278 = vmatprep.subr.bf16.mxu0 0
    %279 = vmatpush1.bf16.msra.mxu0 0
    %280 = vmatprep.subr.bf16.mxu0 0
    %281 = vmatpush1.bf16.msra.mxu0 0
    %282 = vmatprep.subr.bf16.mxu0 0
    %283 = vmatpush1.bf16.msra.mxu0 0
    %284 = vmatprep.subr.bf16.mxu0 0
    %285 = vmatpush1.bf16.msra.mxu0 0
    %286 = vmatprep.subr.bf16.mxu0 0
    %287 = vmatpush1.bf16.msra.mxu0 0
    %288 = vmatprep.subr.bf16.mxu0 0
    %289 = vmatpush1.bf16.msra.mxu0 0
    %290 = vmatprep.subr.bf16.mxu0 0
    %291 = vmatpush1.bf16.msra.mxu0 0
    %292 = vmatprep.subr.bf16.mxu0 0
    %293 = vmatpush1.bf16.msra.mxu0 0
    %294 = vmatprep.subr.bf16.mxu0 0
    %295 = vmatpush1.bf16.msra.mxu0 0
    %296 = vmatprep.subr.bf16.mxu0 0
    %297 = vmatpush1.bf16.msra.mxu0 0
    %298 = vmatprep.subr.bf16.mxu0 0
    %299 = vmatpush1.bf16.msra.mxu0 0
    %300 = vmatprep.subr.bf16.mxu0 0
    %301 = vmatpush1.bf16.msra.mxu0 0
    %302 = vmatprep.mubr.bf16.mxu0 0
    %303 = vmatmul.mubr.bf16.gmra.mrb[0].mxu0 %v97
    %v304 = vpop.f32.mrb[0].mxu0
    %v305 = vadd.f32 %v43, %v304
    %v306 = vpop.f32.mrb[0].mxu0
    %v307 = vadd.f32 %v43, %v306
    %v308 = vpop.f32.mrb[0].mxu0
    %v309 = vpop.f32.mrb[0].mxu0
    %310 = vdwg.mxu0
    %311 = vmatprep.subr.bf16.mxu0 %v241
    %312 = vmatpush1.bf16.msra.mxu0 %v240
    %313 = vmatprep.subr.bf16.mxu0 %v245
    %314 = vmatpush1.bf16.msra.mxu0 %v244
    %315 = vmatprep.subr.bf16.mxu0 %v268
    %316 = vmatpush1.bf16.msra.mxu0 %v265
    %317 = vmatprep.subr.bf16.mxu0 0
    %318 = vmatpush1.bf16.msra.mxu0 0
    %319 = vmatprep.subr.bf16.mxu0 0
    %320 = vmatpush1.bf16.msra.mxu0 0
    %321 = vmatprep.subr.bf16.mxu0 0
    %322 = vmatpush1.bf16.msra.mxu0 0
    %323 = vmatprep.subr.bf16.mxu0 0
    %324 = vmatpush1.bf16.msra.mxu0 0
    %325 = vmatprep.subr.bf16.mxu0 0
    %326 = vmatpush1.bf16.msra.mxu0 0
    %327 = vmatprep.subr.bf16.mxu0 0
    %328 = vmatpush1.bf16.msra.mxu0 0
    %329 = vmatprep.subr.bf16.mxu0 0
    %330 = vmatpush1.bf16.msra.mxu0 0
    %331 = vmatprep.subr.bf16.mxu0 0
    %332 = vmatpush1.bf16.msra.mxu0 0
    %333 = vmatprep.subr.bf16.mxu0 0
    %334 = vmatpush1.bf16.msra.mxu0 0
    %335 = vmatprep.subr.bf16.mxu0 0
    %336 = vmatpush1.bf16.msra.mxu0 0
    %337 = vmatprep.subr.bf16.mxu0 0
    %338 = vmatpush1.bf16.msra.mxu0 0
    %339 = vmatprep.subr.bf16.mxu0 0
    %340 = vmatpush1.bf16.msra.mxu0 0
    %341 = vmatprep.subr.bf16.mxu0 0
    %342 = vmatpush1.bf16.msra.mxu0 0
    %343 = vmatprep.mubr.bf16.mxu0 0
    %344 = vmatmul.mubr.bf16.gmra.mrb[0].mxu0 %v97
    %v345 = vpop.f32.mrb[0].mxu0
    %v346 = vadd.f32 %v43, %v345
    %v347 = vpop.f32.mrb[0].mxu0
    %v348 = vadd.f32 %v43, %v347
    %v349 = vpop.f32.mrb[0].mxu0
    %v350 = vpop.f32.mrb[0].mxu0
    %351 = vdwg.mxu0
    %v352 = vmax.f32 %v305, 0.0
    %v353 = vmax.f32 %v307, 0.0
    %v354 = vmax.f32 %v346, 0.0
    %v355 = vmax.f32 %v348, 0.0
    %v356 = vpack.c.bf16 %v194, %v194
    %v357 = vpack.c.bf16 %v195, %v195
    %v358 = vpack.c.bf16 %v196, %v196
    %v359 = vpack.c.bf16 %v197, %v197
    %v364 = vunpack.c.l.b16 %v356
    %v365 = vunpack.c.l.b16 %v357
    %v366 = vunpack.c.l.b16 %v358
    %v367 = vunpack.c.l.b16 %v359
    %v368 = vpack.c.b16 %v365, %v364
    %v369 = vpack.c.b16 %v367, %v366
    %372 = vst [vmem:[%s4] sm:$0xff] %v368
    %373 = vst [vmem:[%s4 + $0x8] sm:$0xff] %v369
    %v374 = vpack.c.bf16 %v352, %v352
    %v375 = vpack.c.bf16 %v353, %v353
    %v376 = vpack.c.bf16 %v354, %v354
    %v377 = vpack.c.bf16 %v355, %v355
    %v382 = vunpack.c.l.b16 %v374
    %v383 = vunpack.c.l.b16 %v375
    %v384 = vunpack.c.l.b16 %v376
    %v385 = vunpack.c.l.b16 %v377
    %v386 = vpack.c.b16 %v383, %v382
    %v387 = vpack.c.b16 %v385, %v384
    %390 = vst [vmem:[%s5] sm:$0xff] %v386
    %391 = vst [vmem:[%s5 + $0x8] sm:$0xff] %v387
    %s392 = sld [smem:[#allocation2]]
    %v393 = vsub.f32 %v194, %v352
    %v394 = vsub.f32 %v195, %v353
    %v395 = vsub.f32 %v196, %v354
    %v396 = vsub.f32 %v197, %v355
    %v397 = vand.u32 2147483647, %v393
    %v398 = vand.u32 2147483647, %v394
    %v399 = vand.u32 2147483647, %v395
    %v400 = vand.u32 2147483647, %v396
    %v401 = vadd.f32 %v397, %v398
    %v402 = vadd.f32 %v401, %v399
    %v403 = vadd.f32 %v402, %v400
    %404 = vadd.xlane.f32.xlu0 %v403
    %v405 = vpop.xlane.xlu0 %404
    %v406 = vrot.slane %v405, 4
    %v407 = vadd.f32 %v405, %v406
    %v408 = vrot.slane %v407, 2
    %v409 = vadd.f32 %v407, %v408
    %v410 = vrot.slane %v409, 1
    %v411 = vadd.f32 %v409, %v410
    %s412 = vtos %v411
    %s413 = smul.f32 %s412, 0.00024414063
    %s414 = sadd.f32 %s392, %s413
    %s415 = scalar_lea.smem [#allocation2], 0
    %416 = sst [smem:[%s415]] %s414
    // Predicated region
    $region22: #{felix_loss.2} parent=1 // pred_check
      _
    $region23: #{felix_loss.2} parent=1 // pred_check_branch
      %418 = sbr.rel (0) target = $region25
    $region24: #{felix_loss.2} parent=1 // pred_region
      _
    $region25: #{felix_loss.2} parent=1 // pred_fallthru
      _
    // Predicated region
    $region26: #{felix_loss.2} parent=1 // pred_check
      _
    $region27: #{felix_loss.2} parent=1 // pred_check_branch
      %420 = sbr.rel (0) target = $region29
    $region28: #{felix_loss.2} parent=1 // pred_region
      _
    $region29: #{felix_loss.2} parent=1 // pred_fallthru
      _
    // Predicated region
    $region30: #{felix_loss.2} parent=1 // pred_check
      _
    $region31: #{felix_loss.2} parent=1 // pred_check_branch
      %422 = sbr.rel (0) target = $region33
    $region32: #{felix_loss.2} parent=1 // pred_region
      %s424 = ssub.s32 16, 16
      %425 = vsyncadd [#allocation3], %s424
      %428 = dma.smem_to_hbm [#allocation2], 16, %s6, [#allocation3]
    $region33: #{felix_loss.2} parent=1 // pred_fallthru
      _
    // Predicated region
    $region34: #{felix_loss.2} parent=1 // pred_check
      _
    $region35: #{felix_loss.2} parent=1 // pred_check_branch
      %430 = sbr.rel (0) target = $region37
    $region36: #{felix_loss.2} parent=1 // pred_region
      _
    $region37: #{felix_loss.2} parent=1 // pred_fallthru
      _
    // Predicated region
    $region38: #{felix_loss.2} parent=1 // pred_check
      _
    $region39: #{felix_loss.2} parent=1 // pred_check_branch
      %432 = sbr.rel (0) target = $region41
    $region40: #{felix_loss.2} parent=1 // pred_region
      _
    $region41: #{felix_loss.2} parent=1 // pred_fallthru
      _
    // Predicated region
    $region42: #{felix_loss.2} parent=1 // pred_check
      _
    $region43: #{felix_loss.2} parent=1 // pred_check_branch
      %434 = sbr.rel (0) target = $region45
    $region44: #{felix_loss.2} parent=1 // pred_region
      %435 = dma.done [#allocation3], 16
    $region45: #{felix_loss.2} parent=1 // pred_fallthru
      _
    %436 = sfence
    %437 = vsyncpa [#allocation3], 1

// kernel: felix_loss.3
$region0: #{felix_loss.3}
  #allocation0 [shape = 'u32[]', space=smem, size = 0x4, offset = 0x4, fixed_abs, tag = 'smem constant byte address 0x4 - core index']
  #allocation1 [shape = 'u32[144,128]{1,0:T(1,128)}', space=vmem, size = 0x12000, scoped, tag = 'internal scratch']
  %s0 = inlined_call_operand.vmem [shape: bf16[16,72], index: 0, kind: input, shape index: {}]
  %s1 = inlined_call_operand.vmem [shape: bf16[72,512], index: 1, kind: input, shape index: {}]
  %s2 = inlined_call_operand.vmem [shape: bf16[72,512], index: 2, kind: input, shape index: {}]
  %s3 = inlined_call_operand.vmem [shape: f32[16,1], index: 3, kind: input, shape index: {}]
  %s4 = inlined_call_operand.hbm [shape: f32[1,1], index: 4, kind: output, shape index: {}]
  %s5 = sld [smem:[#allocation0]]
  $region30: #{felix_loss.3} parent=0
    _
  %s7 = ssub.s32 1, %s5
  %s8 = scalar_select 0, %s7, %s5
  $region1: #{felix_loss.3} parent=0
    #allocation2 [shape = 'u8[512]{0}', space=smem, size = 0x200, scoped, tag = 'output window, operand 0, single buffered']
    #allocation3 [shape = 's32[1]{0}', space=sflag, size = 0x4, scoped, tag = 'scoped memory for felix_loss.3']
    %9 = vsyncpa [#allocation3], 0
    // Predicated region
    $region2: #{felix_loss.3} parent=1 // pred_check
      _
    $region3: #{felix_loss.3} parent=1 // pred_check_branch
      %11 = sbr.rel (0) target = $region5
    $region4: #{felix_loss.3} parent=1 // pred_region
      _
    $region5: #{felix_loss.3} parent=1 // pred_fallthru
      _
    // Predicated region
    $region6: #{felix_loss.3} parent=1 // pred_check
      _
    $region7: #{felix_loss.3} parent=1 // pred_check_branch
      %13 = sbr.rel (0) target = $region9
    $region8: #{felix_loss.3} parent=1 // pred_region
      _
    $region9: #{felix_loss.3} parent=1 // pred_fallthru
      _
    // Predicated region
    $region10: #{felix_loss.3} parent=1 // pred_check
      _
    $region11: #{felix_loss.3} parent=1 // pred_check_branch
      %15 = sbr.rel (0) target = $region13
    $region12: #{felix_loss.3} parent=1 // pred_region
      _
    $region13: #{felix_loss.3} parent=1 // pred_fallthru
      _
    // Predicated region
    $region14: #{felix_loss.3} parent=1 // pred_check
      _
    $region15: #{felix_loss.3} parent=1 // pred_check_branch
      %17 = sbr.rel (0) target = $region17
    $region16: #{felix_loss.3} parent=1 // pred_region
      _
    $region17: #{felix_loss.3} parent=1 // pred_fallthru
      _
    %p19 = scmp.eq.s32.totalorder 0, 0
    // Predicated region
    $region18: #{felix_loss.3} parent=1 // pred_check
      %p20 = pneg %p19
    $region19: #{felix_loss.3} parent=1 // pred_check_branch
      %22 = sbr.rel (%p20) target = $region21
    $region20: #{felix_loss.3} parent=1 // pred_region
      %s23 = scalar_lea.smem [#allocation2], 0
      %24 = sst [smem:[%s23]] 0.0
    $region21: #{felix_loss.3} parent=1 // pred_fallthru
      _
    %v25 = vld [vmem:[%s0] sm:$0xf]
    %v26 = vld [vmem:[%s0 + $0x4] sm:$0xf]
    %v27 = vld [vmem:[%s3] sm:$0xff]
    %v28 = vld [vmem:[%s3 + $0x8] sm:$0xff]
    %v29 = vld [vmem:[%s1] sm:$0xff]
    %v30 = vld [vmem:[%s1 + $0x8] sm:$0xff]
    %v31 = vld [vmem:[%s1 + $0x10] sm:$0xff]
    %v32 = vld [vmem:[%s1 + $0x18] sm:$0xff]
    %v33 = vld [vmem:[%s1 + $0x20] sm:$0xff]
    %v34 = vld [vmem:[%s1 + $0x28] sm:$0xff]
    %v35 = vld [vmem:[%s1 + $0x30] sm:$0xff]
    %v36 = vld [vmem:[%s1 + $0x38] sm:$0xff]
    %v37 = vld [vmem:[%s1 + $0x40] sm:$0xff]
    %v38 = vld [vmem:[%s1 + $0x48] sm:$0xff]
    %v39 = vld [vmem:[%s1 + $0x50] sm:$0xff]
    %v40 = vld [vmem:[%s1 + $0x58] sm:$0xff]
    %v41 = vld [vmem:[%s1 + $0x60] sm:$0xff]
    %v42 = vld [vmem:[%s1 + $0x68] sm:$0xff]
    %v43 = vld [vmem:[%s1 + $0x70] sm:$0xff]
    %v44 = vld [vmem:[%s1 + $0x78] sm:$0xff]
    %v45 = vld [vmem:[%s1 + $0x80] sm:$0xff]
    %v46 = vld [vmem:[%s1 + $0x88] sm:$0xff]
    %48 = vset.pattern.permute.xlu0 0
    %49 = vperm.xlu0 %48, %v27
    %v50 = vpop.permute.xlu0 %49
    %53 = vset.pattern.permute.xlu0 0
    %54 = vperm.xlu0 %53, %v28
    %v55 = vpop.permute.xlu0 %54
    %v59 = vunpack.c.l.b16 %v25
    %v60 = vunpack.c.l.b16 %v26
    %v61 = vpack.c.b16 %v60, %v59
    %v80 = vunpack.c.l.b16 %v29
    %v81 = vunpack.c.h.b16 %v29
    %v82 = vunpack.c.l.b16 %v30
    %v83 = vunpack.c.h.b16 %v30
    %v84 = vunpack.c.l.b16 %v31
    %v85 = vunpack.c.h.b16 %v31
    %v86 = vunpack.c.l.b16 %v32
    %v87 = vunpack.c.h.b16 %v32
    %v88 = vunpack.c.l.b16 %v33
    %v89 = vunpack.c.h.b16 %v33
    %v90 = vunpack.c.l.b16 %v34
    %v91 = vunpack.c.h.b16 %v34
    %v92 = vunpack.c.l.b16 %v35
    %v93 = vunpack.c.h.b16 %v35
    %v94 = vunpack.c.l.b16 %v36
    %v95 = vunpack.c.h.b16 %v36
    %v96 = vunpack.c.l.b16 %v37
    %v97 = vunpack.c.h.b16 %v37
    %v98 = vunpack.c.l.b16 %v38
    %v99 = vunpack.c.h.b16 %v38
    %v100 = vunpack.c.l.b16 %v39
    %v101 = vunpack.c.h.b16 %v39
    %v102 = vunpack.c.l.b16 %v40
    %v103 = vunpack.c.h.b16 %v40
    %v104 = vunpack.c.l.b16 %v41
    %v105 = vunpack.c.h.b16 %v41
    %v106 = vunpack.c.l.b16 %v42
    %v107 = vunpack.c.h.b16 %v42
    %v108 = vunpack.c.l.b16 %v43
    %v109 = vunpack.c.h.b16 %v43
    %v110 = vunpack.c.l.b16 %v44
    %v111 = vunpack.c.h.b16 %v44
    %v112 = vunpack.c.l.b16 %v45
    %v113 = vunpack.c.h.b16 %v45
    %v114 = vunpack.c.l.b16 %v46
    %v115 = vunpack.c.h.b16 %v46
    %v116 = vpack.c.b16 %v84, %v80
    %v117 = vpack.c.b16 %v85, %v81
    %v118 = vpack.c.b16 %v86, %v82
    %v119 = vpack.c.b16 %v87, %v83
    %v120 = vpack.c.b16 %v92, %v88
    %v121 = vpack.c.b16 %v93, %v89
    %v122 = vpack.c.b16 %v94, %v90
    %v123 = vpack.c.b16 %v95, %v91
    %v124 = vpack.c.b16 %v100, %v96
    %v125 = vpack.c.b16 %v101, %v97
    %v126 = vpack.c.b16 %v102, %v98
    %v127 = vpack.c.b16 %v103, %v99
    %v128 = vpack.c.b16 %v108, %v104
    %v129 = vpack.c.b16 %v109, %v105
    %v130 = vpack.c.b16 %v110, %v106
    %v131 = vpack.c.b16 %v111, %v107
    %v132 = vpack.c.b16 %v112, %v112
    %v133 = vpack.c.b16 %v113, %v113
    %v134 = vpack.c.b16 %v114, %v114
    %v135 = vpack.c.b16 %v115, %v115
    %vm152 = vcmask 588800
    %v154 = vsel %vm152, %v61, 0
    %vm156 = vcmask 1043456
    %v158 = vsel %vm156, %v132, 0
    %v161 = vsel %vm156, %v133, 0
    %v164 = vsel %vm156, %v134, 0
    %v167 = vsel %vm156, %v135, 0
    %169 = vmatprep.subr.bf16.mxu0 %v117
    %170 = vmatpush1.bf16.msra.mxu0 %v116
    %171 = vmatprep.subr.bf16.mxu0 %v121
    %172 = vmatpush1.bf16.msra.mxu0 %v120
    %173 = vmatprep.subr.bf16.mxu0 %v125
    %174 = vmatpush1.bf16.msra.mxu0 %v124
    %175 = vmatprep.subr.bf16.mxu0 %v129
    %176 = vmatpush1.bf16.msra.mxu0 %v128
    %177 = vmatprep.subr.bf16.mxu0 %v161
    %178 = vmatpush1.bf16.msra.mxu0 %v158
    %179 = vmatprep.subr.bf16.mxu0 0
    %180 = vmatpush1.bf16.msra.mxu0 0
    %181 = vmatprep.subr.bf16.mxu0 0
    %182 = vmatpush1.bf16.msra.mxu0 0
    %183 = vmatprep.subr.bf16.mxu0 0
    %184 = vmatpush1.bf16.msra.mxu0 0
    %185 = vmatprep.subr.bf16.mxu0 0
    %186 = vmatpush1.bf16.msra.mxu0 0
    %187 = vmatprep.subr.bf16.mxu0 0
    %188 = vmatpush1.bf16.msra.mxu0 0
    %189 = vmatprep.subr.bf16.mxu0 0
    %190 = vmatpush1.bf16.msra.mxu0 0
    %191 = vmatprep.subr.bf16.mxu0 0
    %192 = vmatpush1.bf16.msra.mxu0 0
    %193 = vmatprep.subr.bf16.mxu0 0
    %194 = vmatpush1.bf16.msra.mxu0 0
    %195 = vmatprep.subr.bf16.mxu0 0
    %196 = vmatpush1.bf16.msra.mxu0 0
    %197 = vmatprep.subr.bf16.mxu0 0
    %198 = vmatpush1.bf16.msra.mxu0 0
    %199 = vmatprep.subr.bf16.mxu0 0
    %200 = vmatpush1.bf16.msra.mxu0 0
    %201 = vmatprep.mubr.bf16.mxu0 0
    %202 = vmatmul.mubr.bf16.gmra.mrb[0].mxu0 %v154
    %v203 = vpop.f32.mrb[0].mxu0
    %v204 = vadd.f32 %v50, %v203
    %v205 = vpop.f32.mrb[0].mxu0
    %v206 = vadd.f32 %v50, %v205
    %v207 = vpop.f32.mrb[0].mxu0
    %v208 = vadd.f32 %v55, %v207
    %v209 = vpop.f32.mrb[0].mxu0
    %v210 = vadd.f32 %v55, %v209
    %211 = vdwg.mxu0
    %212 = vmatprep.subr.bf16.mxu0 %v119
    %213 = vmatpush1.bf16.msra.mxu0 %v118
    %214 = vmatprep.subr.bf16.mxu0 %v123
    %215 = vmatpush1.bf16.msra.mxu0 %v122
    %216 = vmatprep.subr.bf16.mxu0 %v127
    %217 = vmatpush1.bf16.msra.mxu0 %v126
    %218 = vmatprep.subr.bf16.mxu0 %v131
    %219 = vmatpush1.bf16.msra.mxu0 %v130
    %220 = vmatprep.subr.bf16.mxu0 %v167
    %221 = vmatpush1.bf16.msra.mxu0 %v164
    %222 = vmatprep.subr.bf16.mxu0 0
    %223 = vmatpush1.bf16.msra.mxu0 0
    %224 = vmatprep.subr.bf16.mxu0 0
    %225 = vmatpush1.bf16.msra.mxu0 0
    %226 = vmatprep.subr.bf16.mxu0 0
    %227 = vmatpush1.bf16.msra.mxu0 0
    %228 = vmatprep.subr.bf16.mxu0 0
    %229 = vmatpush1.bf16.msra.mxu0 0
    %230 = vmatprep.subr.bf16.mxu0 0
    %231 = vmatpush1.bf16.msra.mxu0 0
    %232 = vmatprep.subr.bf16.mxu0 0
    %233 = vmatpush1.bf16.msra.mxu0 0
    %234 = vmatprep.subr.bf16.mxu0 0
    %235 = vmatpush1.bf16.msra.mxu0 0
    %236 = vmatprep.subr.bf16.mxu0 0
    %237 = vmatpush1.bf16.msra.mxu0 0
    %238 = vmatprep.subr.bf16.mxu0 0
    %239 = vmatpush1.bf16.msra.mxu0 0
    %240 = vmatprep.subr.bf16.mxu0 0
    %241 = vmatpush1.bf16.msra.mxu0 0
    %242 = vmatprep.subr.bf16.mxu0 0
    %243 = vmatpush1.bf16.msra.mxu0 0
    %244 = vmatprep.mubr.bf16.mxu0 0
    %245 = vmatmul.mubr.bf16.gmra.mrb[0].mxu0 %v154
    %v246 = vpop.f32.mrb[0].mxu0
    %v247 = vadd.f32 %v50, %v246
    %v248 = vpop.f32.mrb[0].mxu0
    %v249 = vadd.f32 %v50, %v248
    %v250 = vpop.f32.mrb[0].mxu0
    %v251 = vadd.f32 %v55, %v250
    %v252 = vpop.f32.mrb[0].mxu0
    %v253 = vadd.f32 %v55, %v252
    %254 = vdwg.mxu0
    %v255 = vmax.f32 %v204, 0.0
    %v256 = vmax.f32 %v206, 0.0
    %v257 = vmax.f32 %v247, 0.0
    %v258 = vmax.f32 %v249, 0.0
    %v259 = vmax.f32 %v208, 0.0
    %v260 = vmax.f32 %v210, 0.0
    %v261 = vmax.f32 %v251, 0.0
    %v262 = vmax.f32 %v253, 0.0
    %v263 = vld [vmem:[%s2] sm:$0xff]
    %v264 = vld [vmem:[%s2 + $0x8] sm:$0xff]
    %v265 = vld [vmem:[%s2 + $0x10] sm:$0xff]
    %v266 = vld [vmem:[%s2 + $0x18] sm:$0xff]
    %v267 = vld [vmem:[%s2 + $0x20] sm:$0xff]
    %v268 = vld [vmem:[%s2 + $0x28] sm:$0xff]
    %v269 = vld [vmem:[%s2 + $0x30] sm:$0xff]
    %v270 = vld [vmem:[%s2 + $0x38] sm:$0xff]
    %v271 = vld [vmem:[%s2 + $0x40] sm:$0xff]
    %v272 = vld [vmem:[%s2 + $0x48] sm:$0xff]
    %v273 = vld [vmem:[%s2 + $0x50] sm:$0xff]
    %v274 = vld [vmem:[%s2 + $0x58] sm:$0xff]
    %v275 = vld [vmem:[%s2 + $0x60] sm:$0xff]
    %v276 = vld [vmem:[%s2 + $0x68] sm:$0xff]
    %v277 = vld [vmem:[%s2 + $0x70] sm:$0xff]
    %v278 = vld [vmem:[%s2 + $0x78] sm:$0xff]
    %v279 = vld [vmem:[%s2 + $0x80] sm:$0xff]
    %v280 = vld [vmem:[%s2 + $0x88] sm:$0xff]
    %v299 = vunpack.c.l.b16 %v263
    %v300 = vunpack.c.h.b16 %v263
    %v301 = vunpack.c.l.b16 %v264
    %v302 = vunpack.c.h.b16 %v264
    %v303 = vunpack.c.l.b16 %v265
    %v304 = vunpack.c.h.b16 %v265
    %v305 = vunpack.c.l.b16 %v266
    %v306 = vunpack.c.h.b16 %v266
    %v307 = vunpack.c.l.b16 %v267
    %v308 = vunpack.c.h.b16 %v267
    %v309 = vunpack.c.l.b16 %v268
    %v310 = vunpack.c.h.b16 %v268
    %v311 = vunpack.c.l.b16 %v269
    %v312 = vunpack.c.h.b16 %v269
    %v313 = vunpack.c.l.b16 %v270
    %v314 = vunpack.c.h.b16 %v270
    %v315 = vunpack.c.l.b16 %v271
    %v316 = vunpack.c.h.b16 %v271
    %v317 = vunpack.c.l.b16 %v272
    %v318 = vunpack.c.h.b16 %v272
    %v319 = vunpack.c.l.b16 %v273
    %v320 = vunpack.c.h.b16 %v273
    %v321 = vunpack.c.l.b16 %v274
    %v322 = vunpack.c.h.b16 %v274
    %v323 = vunpack.c.l.b16 %v275
    %v324 = vunpack.c.h.b16 %v275
    %v325 = vunpack.c.l.b16 %v276
    %v326 = vunpack.c.h.b16 %v276
    %v327 = vunpack.c.l.b16 %v277
    %v328 = vunpack.c.h.b16 %v277
    %v329 = vunpack.c.l.b16 %v278
    %v330 = vunpack.c.h.b16 %v278
    %v331 = vunpack.c.l.b16 %v279
    %v332 = vunpack.c.h.b16 %v279
    %v333 = vunpack.c.l.b16 %v280
    %v334 = vunpack.c.h.b16 %v280
    %v335 = vpack.c.b16 %v303, %v299
    %v336 = vpack.c.b16 %v304, %v300
    %v337 = vpack.c.b16 %v305, %v301
    %v338 = vpack.c.b16 %v306, %v302
    %v339 = vpack.c.b16 %v311, %v307
    %v340 = vpack.c.b16 %v312, %v308
    %v341 = vpack.c.b16 %v313, %v309
    %v342 = vpack.c.b16 %v314, %v310
    %v343 = vpack.c.b16 %v319, %v315
    %v344 = vpack.c.b16 %v320, %v316
    %v345 = vpack.c.b16 %v321, %v317
    %v346 = vpack.c.b16 %v322, %v318
    %v347 = vpack.c.b16 %v327, %v323
    %v348 = vpack.c.b16 %v328, %v324
    %v349 = vpack.c.b16 %v329, %v325
    %v350 = vpack.c.b16 %v330, %v326
    %v351 = vpack.c.b16 %v331, %v331
    %v352 = vpack.c.b16 %v332, %v332
    %v353 = vpack.c.b16 %v333, %v333
    %v354 = vpack.c.b16 %v334, %v334
    %v372 = vsel %vm156, %v351, 0
    %v375 = vsel %vm156, %v352, 0
    %v378 = vsel %vm156, %v353, 0
    %v381 = vsel %vm156, %v354, 0
    %383 = vmatprep.subr.bf16.mxu0 %v336
    %384 = vmatpush1.bf16.msra.mxu0 %v335
    %385 = vmatprep.subr.bf16.mxu0 %v340
    %386 = vmatpush1.bf16.msra.mxu0 %v339
    %387 = vmatprep.subr.bf16.mxu0 %v344
    %388 = vmatpush1.bf16.msra.mxu0 %v343
    %389 = vmatprep.subr.bf16.mxu0 %v348
    %390 = vmatpush1.bf16.msra.mxu0 %v347
    %391 = vmatprep.subr.bf16.mxu0 %v375
    %392 = vmatpush1.bf16.msra.mxu0 %v372
    %393 = vmatprep.subr.bf16.mxu0 0
    %394 = vmatpush1.bf16.msra.mxu0 0
    %395 = vmatprep.subr.bf16.mxu0 0
    %396 = vmatpush1.bf16.msra.mxu0 0
    %397 = vmatprep.subr.bf16.mxu0 0
    %398 = vmatpush1.bf16.msra.mxu0 0
    %399 = vmatprep.subr.bf16.mxu0 0
    %400 = vmatpush1.bf16.msra.mxu0 0
    %401 = vmatprep.subr.bf16.mxu0 0
    %402 = vmatpush1.bf16.msra.mxu0 0
    %403 = vmatprep.subr.bf16.mxu0 0
    %404 = vmatpush1.bf16.msra.mxu0 0
    %405 = vmatprep.subr.bf16.mxu0 0
    %406 = vmatpush1.bf16.msra.mxu0 0
    %407 = vmatprep.subr.bf16.mxu0 0
    %408 = vmatpush1.bf16.msra.mxu0 0
    %409 = vmatprep.subr.bf16.mxu0 0
    %410 = vmatpush1.bf16.msra.mxu0 0
    %411 = vmatprep.subr.bf16.mxu0 0
    %412 = vmatpush1.bf16.msra.mxu0 0
    %413 = vmatprep.subr.bf16.mxu0 0
    %414 = vmatpush1.bf16.msra.mxu0 0
    %415 = vmatprep.mubr.bf16.mxu0 0
    %416 = vmatmul.mubr.bf16.gmra.mrb[0].mxu0 %v154
    %v417 = vpop.f32.mrb[0].mxu0
    %v418 = vadd.f32 %v50, %v417
    %v419 = vpop.f32.mrb[0].mxu0
    %v420 = vadd.f32 %v50, %v419
    %v421 = vpop.f32.mrb[0].mxu0
    %v422 = vadd.f32 %v55, %v421
    %v423 = vpop.f32.mrb[0].mxu0
    %v424 = vadd.f32 %v55, %v423
    %425 = vdwg.mxu0
    %426 = vmatprep.subr.bf16.mxu0 %v338
    %427 = vmatpush1.bf16.msra.mxu0 %v337
    %428 = vmatprep.subr.bf16.mxu0 %v342
    %429 = vmatpush1.bf16.msra.mxu0 %v341
    %430 = vmatprep.subr.bf16.mxu0 %v346
    %431 = vmatpush1.bf16.msra.mxu0 %v345
    %432 = vmatprep.subr.bf16.mxu0 %v350
    %433 = vmatpush1.bf16.msra.mxu0 %v349
    %434 = vmatprep.subr.bf16.mxu0 %v381
    %435 = vmatpush1.bf16.msra.mxu0 %v378
    %436 = vmatprep.subr.bf16.mxu0 0
    %437 = vmatpush1.bf16.msra.mxu0 0
    %438 = vmatprep.subr.bf16.mxu0 0
    %439 = vmatpush1.bf16.msra.mxu0 0
    %440 = vmatprep.subr.bf16.mxu0 0
    %441 = vmatpush1.bf16.msra.mxu0 0
    %442 = vmatprep.subr.bf16.mxu0 0
    %443 = vmatpush1.bf16.msra.mxu0 0
    %444 = vmatprep.subr.bf16.mxu0 0
    %445 = vmatpush1.bf16.msra.mxu0 0
    %446 = vmatprep.subr.bf16.mxu0 0
    %447 = vmatpush1.bf16.msra.mxu0 0
    %448 = vmatprep.subr.bf16.mxu0 0
    %449 = vmatpush1.bf16.msra.mxu0 0
    %450 = vmatprep.subr.bf16.mxu0 0
    %451 = vmatpush1.bf16.msra.mxu0 0
    %452 = vmatprep.subr.bf16.mxu0 0
    %453 = vmatpush1.bf16.msra.mxu0 0
    %454 = vmatprep.subr.bf16.mxu0 0
    %455 = vmatpush1.bf16.msra.mxu0 0
    %456 = vmatprep.subr.bf16.mxu0 0
    %457 = vmatpush1.bf16.msra.mxu0 0
    %458 = vmatprep.mubr.bf16.mxu0 0
    %459 = vmatmul.mubr.bf16.gmra.mrb[0].mxu0 %v154
    %v460 = vpop.f32.mrb[0].mxu0
    %v461 = vadd.f32 %v50, %v460
    %v462 = vpop.f32.mrb[0].mxu0
    %v463 = vadd.f32 %v50, %v462
    %v464 = vpop.f32.mrb[0].mxu0
    %v465 = vadd.f32 %v55, %v464
    %v466 = vpop.f32.mrb[0].mxu0
    %v467 = vadd.f32 %v55, %v466
    %468 = vdwg.mxu0
    %v469 = vmax.f32 %v418, 0.0
    %v470 = vmax.f32 %v420, 0.0
    %v471 = vmax.f32 %v461, 0.0
    %v472 = vmax.f32 %v463, 0.0
    %v473 = vmax.f32 %v422, 0.0
    %v474 = vmax.f32 %v424, 0.0
    %v475 = vmax.f32 %v465, 0.0
    %v476 = vmax.f32 %v467, 0.0
    %s477 = sld [smem:[#allocation2]]
    %v478 = vsub.f32 %v255, %v469
    %v479 = vsub.f32 %v256, %v470
    %v480 = vsub.f32 %v257, %v471
    %v481 = vsub.f32 %v258, %v472
    %v482 = vsub.f32 %v259, %v473
    %v483 = vsub.f32 %v260, %v474
    %v484 = vsub.f32 %v261, %v475
    %v485 = vsub.f32 %v262, %v476
    %v486 = vand.u32 2147483647, %v478
    %v487 = vand.u32 2147483647, %v479
    %v488 = vand.u32 2147483647, %v480
    %v489 = vand.u32 2147483647, %v481
    %v490 = vand.u32 2147483647, %v482
    %v491 = vand.u32 2147483647, %v483
    %v492 = vand.u32 2147483647, %v484
    %v493 = vand.u32 2147483647, %v485
    %v494 = vadd.f32 %v486, %v487
    %v495 = vadd.f32 %v494, %v488
    %v496 = vadd.f32 %v495, %v489
    %v497 = vadd.f32 %v496, %v490
    %v498 = vadd.f32 %v497, %v491
    %v499 = vadd.f32 %v498, %v492
    %v500 = vadd.f32 %v499, %v493
    %501 = vadd.xlane.f32.xlu0 %v500
    %v502 = vpop.xlane.xlu0 %501
    %v503 = vrot.slane %v502, 4
    %v504 = vadd.f32 %v502, %v503
    %v505 = vrot.slane %v504, 2
    %v506 = vadd.f32 %v504, %v505
    %v507 = vrot.slane %v506, 1
    %v508 = vadd.f32 %v506, %v507
    %s509 = vtos %v508
    %s510 = smul.f32 %s509, 6.1035156e-05
    %s511 = sadd.f32 %s477, %s510
    %s512 = scalar_lea.smem [#allocation2], 0
    %513 = sst [smem:[%s512]] %s511
    // Predicated region
    $region22: #{felix_loss.3} parent=1 // pred_check
      _
    $region23: #{felix_loss.3} parent=1 // pred_check_branch
      %515 = sbr.rel (0) target = $region25
    $region24: #{felix_loss.3} parent=1 // pred_region
      %s517 = ssub.s32 16, 16
      %518 = vsyncadd [#allocation3], %s517
      %521 = dma.smem_to_hbm [#allocation2], 16, %s4, [#allocation3]
    $region25: #{felix_loss.3} parent=1 // pred_fallthru
      _
    // Predicated region
    $region26: #{felix_loss.3} parent=1 // pred_check
      _
    $region27: #{felix_loss.3} parent=1 // pred_check_branch
      %523 = sbr.rel (0) target = $region29
    $region28: #{felix_loss.3} parent=1 // pred_region
      %524 = dma.done [#allocation3], 16
    $region29: #{felix_loss.3} parent=1 // pred_fallthru
      _
    %525 = sfence
    %526 = vsyncpa [#allocation3], 1

</llo_original>
